<compile_context>
chip_gen: v5e
topology: v5e:2x2
jax: 0.10.0
libtpu: 0.0.40
codegen_flags: <defaults>
</compile_context>

<pallas_src>
import jax
import jax.numpy as jnp
from jax.experimental import pallas as pl
from jax.experimental.pallas import tpu as pltpu  # noqa: F401  (TPU backend)

block_size = 8   # max sequence length (causal mask size)
n_embd = 32
head_size = 16


def head_kernel(x_ref, w_ref, o_ref):
    # x_ref: (B, T, C) in VMEM; w_ref: (C, 3H) fused [Wk | Wq*scale | Wv]; o_ref: (B, T, H)
    B, T, C = x_ref.shape
    H = o_ref.shape[-1]

    # Single fused projection: (B*T, C) @ (C, 3H) -> (B*T, 3H). One MXU pass,
    # one weight DMA, instead of 3 sliver matmuls.
    x2 = x_ref[...].reshape(B * T, C)
    kqv = jnp.dot(x2, w_ref[...], preferred_element_type=jnp.float32)

    k2 = kqv[:, :H]           # (B*T, H)
    q2 = kqv[:, H:2 * H]      # (B*T, H)  -- 1/sqrt(H) already folded into weights
    v2 = kqv[:, 2 * H:]       # (B*T, H)

    # Causal (lower-triangular) mask, built once (T is static == block_size).
    row = jax.lax.broadcasted_iota(jnp.int32, (T, T), 0)
    col = jax.lax.broadcasted_iota(jnp.int32, (T, T), 1)
    causal = col <= row

    # Statically-unrolled loop over the tiny batch: pure 2-D MXU ops, sublane-
    # aligned row slices (multiples of T=8).
    for b in range(B):
        q = q2[b * T:(b + 1) * T, :]
        k = k2[b * T:(b + 1) * T, :]
        v = v2[b * T:(b + 1) * T, :]

        # q @ k.T without materializing the transpose: contract last dims.
        wei = jax.lax.dot_general(
            q, k, (((1,), (1,)), ((), ())),
            preferred_element_type=jnp.float32)                 # (T, T)

        wei = jnp.where(causal, wei, -jnp.inf)
        # Numerically stable softmax; diagonal is always unmasked so max is finite.
        wei = wei - jnp.max(wei, axis=-1, keepdims=True)
        p = jnp.exp(wei)
        inv_l = pl.reciprocal(jnp.sum(p, axis=-1, keepdims=True), approx=True)
        p = p * inv_l

        out = jnp.dot(p, v, preferred_element_type=jnp.float32)  # (T, H)
        o_ref[b] = out.astype(o_ref.dtype)


def head_forward(x, wk, wq, wv):
    """x: (B, T, C) float32; wk/wq/wv: (C, H) float32 (already transposed)."""
    B, T, C = x.shape
    H = wk.shape[1]
    # Fuse the three projection weights; bake the attention scale into Wq so the
    # scaled logits come straight out of the MXU.
    scale = jnp.asarray(H, x.dtype) ** -0.5
    w_fused = jnp.concatenate([wk, wq * scale, wv], axis=1)      # (C, 3H)

    # No grid: whole problem (a few KiB) fits in VMEM in a single invocation;
    # block shapes equal full array shapes, satisfying the (8,128) rule.
    return pl.pallas_call(
        head_kernel,
        out_shape=jax.ShapeDtypeStruct((B, T, H), x.dtype),
    )(x, w_fused)


def head_reference(x, wk, wq, wv):
    """Plain-JAX reference mirroring the PyTorch forward exactly."""
    B, T, C = x.shape
    k = x @ wk
    q = x @ wq
    v = x @ wv
    wei = (q @ jnp.swapaxes(k, -2, -1)) * (k.shape[-1] ** -0.5)
    tril = jnp.tril(jnp.ones((block_size, block_size)))
    wei = jnp.where(tril[:T, :T] == 0, -jnp.inf, wei)
    wei = jax.nn.softmax(wei, axis=-1)
    return wei @ v


if __name__ == "__main__":
    key = jax.random.PRNGKey(0)
    kx, kk, kq, kv = jax.random.split(key, 4)

    B, T, C, H = 2, block_size, n_embd, head_size

    x = jax.random.normal(kx, (B, T, C), dtype=jnp.float32)
    # Deterministic "nn.Linear(n_embd, head_size)" weights, stored pre-transposed (C, H).
    wk = jax.random.normal(kk, (C, H), dtype=jnp.float32) * 0.1
    wq = jax.random.normal(kq, (C, H), dtype=jnp.float32) * 0.1
    wv = jax.random.normal(kv, (C, H), dtype=jnp.float32) * 0.1

    out = head_forward(x, wk, wq, wv)
    out = jax.block_until_ready(out)

    ref = head_reference(x, wk, wq, wv)
    assert out.shape == (B, T, H)
    # Tolerance relaxed slightly vs 1e-5 because of the EUP approximate
    # reciprocal in the softmax normalization (and scale folded into Wq).
    assert jnp.allclose(out, ref, atol=2e-3, rtol=2e-3), "mismatch vs reference"

    print("KERNEL_OK")
</pallas_src>

<mosaic_0001>
module attributes {stable_mosaic.version = 11 : i64} {
  func.func @head_kernel(%arg0: memref<2x8x32xf32, #tpu.memory_space<vmem>>, %arg1: memref<32x48xf32, #tpu.memory_space<vmem>>, %arg2: memref<2x8x16xf32, #tpu.memory_space<vmem>>) attributes {dimension_semantics = [], scalar_prefetch = 0 : i64, scratch_operands = 0 : i64, tpu.core_type = #tpu.core_type<tc>} {
    %c0 = arith.constant 0 : index
    %c0_0 = arith.constant 0 : index
    %c0_1 = arith.constant 0 : index
    %0 = vector.load %arg0[%c0, %c0_0, %c0_1] : memref<2x8x32xf32, #tpu.memory_space<vmem>>, vector<2x8x32xf32>
    %1 = vector.shape_cast %0 : vector<2x8x32xf32> to vector<16x32xf32>
    %c0_2 = arith.constant 0 : index
    %c0_3 = arith.constant 0 : index
    %2 = vector.load %arg1[%c0_2, %c0_3] : memref<32x48xf32, #tpu.memory_space<vmem>>, vector<32x48xf32>
    %cst = arith.constant dense<0.000000e+00> : vector<16x48xf32>
    %3 = tpu.matmul %1, %2, %cst {dimension_numbers = #tpu.dot_dimension_numbers<[1], [0], [0], [1], [0, 0, 1, 1], [], []>} : vector<16x32xf32>, vector<32x48xf32>, vector<16x48xf32> -> vector<16x48xf32>
    %4 = vector.extract_strided_slice %3 {offsets = [0, 0], sizes = [16, 16], strides = [1, 1]} : vector<16x48xf32> to vector<16x16xf32>
    %5 = vector.extract_strided_slice %3 {offsets = [0, 16], sizes = [16, 16], strides = [1, 1]} : vector<16x48xf32> to vector<16x16xf32>
    %6 = vector.extract_strided_slice %3 {offsets = [0, 32], sizes = [16, 16], strides = [1, 1]} : vector<16x48xf32> to vector<16x16xf32>
    %7 = tpu.iota {dimensions = array<i32: 0>} : vector<8x8xi32>
    %8 = tpu.iota {dimensions = array<i32: 1>} : vector<8x8xi32>
    %9 = arith.cmpi sle, %8, %7 : vector<8x8xi32>
    %10 = vector.extract_strided_slice %5 {offsets = [0, 0], sizes = [8, 16], strides = [1, 1]} : vector<16x16xf32> to vector<8x16xf32>
    %11 = vector.extract_strided_slice %4 {offsets = [0, 0], sizes = [8, 16], strides = [1, 1]} : vector<16x16xf32> to vector<8x16xf32>
    %12 = vector.extract_strided_slice %6 {offsets = [0, 0], sizes = [8, 16], strides = [1, 1]} : vector<16x16xf32> to vector<8x16xf32>
    %cst_4 = arith.constant dense<0.000000e+00> : vector<8x8xf32>
    %13 = tpu.matmul %10, %11, %cst_4 {dimension_numbers = #tpu.dot_dimension_numbers<[1], [1], [0], [0], [0, 0, 1, 0], [], []>} : vector<8x16xf32>, vector<8x16xf32>, vector<8x8xf32> -> vector<8x8xf32>
    %cst_5 = arith.constant 0xFF800000 : f32
    %14 = vector.broadcast %cst_5 : f32 to vector<8x8xf32>
    %15 = arith.select %9, %13, %14 : vector<8x8xi1>, vector<8x8xf32>
    %cst_6 = arith.constant dense<0xFF800000> : vector<8xf32>
    %16 = vector.multi_reduction <maximumf>, %15, %cst_6 [1] : vector<8x8xf32> to vector<8xf32>
    %17 = vector.shape_cast %16 : vector<8xf32> to vector<8x1xf32>
    %18 = vector.broadcast %17 : vector<8x1xf32> to vector<8x8xf32>
    %19 = arith.subf %15, %18 : vector<8x8xf32>
    %20 = math.exp %19 : vector<8x8xf32>
    %cst_7 = arith.constant dense<0.000000e+00> : vector<8xf32>
    %21 = vector.multi_reduction <add>, %20, %cst_7 [1] : vector<8x8xf32> to vector<8xf32>
    %22 = vector.shape_cast %21 : vector<8xf32> to vector<8x1xf32>
    %23 = tpu.reciprocal %22 {approx = true} : vector<8x1xf32> -> vector<8x1xf32>
    %24 = vector.broadcast %23 : vector<8x1xf32> to vector<8x8xf32>
    %25 = arith.mulf %20, %24 : vector<8x8xf32>
    %cst_8 = arith.constant dense<0.000000e+00> : vector<8x16xf32>
    %26 = tpu.matmul %25, %12, %cst_8 {dimension_numbers = #tpu.dot_dimension_numbers<[1], [0], [0], [1], [0, 0, 1, 1], [], []>} : vector<8x8xf32>, vector<8x16xf32>, vector<8x16xf32> -> vector<8x16xf32>
    %c0_9 = arith.constant 0 : index
    %c0_10 = arith.constant 0 : index
    %c0_11 = arith.constant 0 : index
    %27 = vector.load %arg2[%c0_9, %c0_10, %c0_11] : memref<2x8x16xf32, #tpu.memory_space<vmem>>, vector<1x8x16xf32>
    %28 = vector.shape_cast %27 : vector<1x8x16xf32> to vector<8x16xf32>
    %29 = vector.shape_cast %26 : vector<8x16xf32> to vector<1x8x16xf32>
    tpu.vector_store %arg2[%c0_9, %c0_10, %c0_11], %29 {strides = array<i32>} : memref<2x8x16xf32, #tpu.memory_space<vmem>>, vector<1x8x16xf32>,
    %30 = vector.extract_strided_slice %5 {offsets = [8, 0], sizes = [8, 16], strides = [1, 1]} : vector<16x16xf32> to vector<8x16xf32>
    %31 = vector.extract_strided_slice %4 {offsets = [8, 0], sizes = [8, 16], strides = [1, 1]} : vector<16x16xf32> to vector<8x16xf32>
    %32 = vector.extract_strided_slice %6 {offsets = [8, 0], sizes = [8, 16], strides = [1, 1]} : vector<16x16xf32> to vector<8x16xf32>
    %cst_12 = arith.constant dense<0.000000e+00> : vector<8x8xf32>
    %33 = tpu.matmul %30, %31, %cst_12 {dimension_numbers = #tpu.dot_dimension_numbers<[1], [1], [0], [0], [0, 0, 1, 0], [], []>} : vector<8x16xf32>, vector<8x16xf32>, vector<8x8xf32> -> vector<8x8xf32>
    %cst_13 = arith.constant 0xFF800000 : f32
    %34 = vector.broadcast %cst_13 : f32 to vector<8x8xf32>
    %35 = arith.select %9, %33, %34 : vector<8x8xi1>, vector<8x8xf32>
    %cst_14 = arith.constant dense<0xFF800000> : vector<8xf32>
    %36 = vector.multi_reduction <maximumf>, %35, %cst_14 [1] : vector<8x8xf32> to vector<8xf32>
    %37 = vector.shape_cast %36 : vector<8xf32> to vector<8x1xf32>
    %38 = vector.broadcast %37 : vector<8x1xf32> to vector<8x8xf32>
    %39 = arith.subf %35, %38 : vector<8x8xf32>
    %40 = math.exp %39 : vector<8x8xf32>
    %cst_15 = arith.constant dense<0.000000e+00> : vector<8xf32>
    %41 = vector.multi_reduction <add>, %40, %cst_15 [1] : vector<8x8xf32> to vector<8xf32>
    %42 = vector.shape_cast %41 : vector<8xf32> to vector<8x1xf32>
    %43 = tpu.reciprocal %42 {approx = true} : vector<8x1xf32> -> vector<8x1xf32>
    %44 = vector.broadcast %43 : vector<8x1xf32> to vector<8x8xf32>
    %45 = arith.mulf %40, %44 : vector<8x8xf32>
    %cst_16 = arith.constant dense<0.000000e+00> : vector<8x16xf32>
    %46 = tpu.matmul %45, %32, %cst_16 {dimension_numbers = #tpu.dot_dimension_numbers<[1], [0], [0], [1], [0, 0, 1, 1], [], []>} : vector<8x8xf32>, vector<8x16xf32>, vector<8x16xf32> -> vector<8x16xf32>
    %c1 = arith.constant 1 : index
    %c0_17 = arith.constant 0 : index
    %c0_18 = arith.constant 0 : index
    %47 = vector.load %arg2[%c1, %c0_17, %c0_18] : memref<2x8x16xf32, #tpu.memory_space<vmem>>, vector<1x8x16xf32>
    %48 = vector.shape_cast %47 : vector<1x8x16xf32> to vector<8x16xf32>
    %49 = vector.shape_cast %46 : vector<8x16xf32> to vector<1x8x16xf32>
    tpu.vector_store %arg2[%c1, %c0_17, %c0_18], %49 {strides = array<i32>} : memref<2x8x16xf32, #tpu.memory_space<vmem>>, vector<1x8x16xf32>,
    return
  }
}

</mosaic_0001>

<llo_original>
// kernel: tpu_custom_call.1
$region0: #{tpu_custom_call.1}
  #allocation0 [shape = 'u32[]', space=smem, size = 0x4, offset = 0x4, fixed_abs, tag = 'smem constant byte address 0x4 - core index']
  #allocation1 [shape = 'u32[72,128]{1,0:T(1,128)}', space=vmem, size = 0x9000, scoped, tag = 'internal scratch']
  %s0 = inlined_call_operand.hbm [shape: f32[2,8,32], index: 0, kind: input, shape index: {}]
  %s1 = inlined_call_operand.hbm [shape: f32[32,48], index: 1, kind: input, shape index: {}]
  %s2 = inlined_call_operand.hbm [shape: f32[2,8,16], index: 2, kind: output, shape index: {}]
  %s3 = sld [smem:[#allocation0]]
  $region26: #{tpu_custom_call.1} parent=0
    _
  %s5 = ssub.s32 1, %s3
  %s6 = scalar_select 0, %s5, %s3
  $region1: #{tpu_custom_call.1} parent=0
    #allocation2 [shape = 'u8[8192]{0}', space=vmem, size = 0x2000, scoped, tag = 'input window, operand 0, single buffered']
    #allocation3 [shape = 's32[1]{0}', space=sflag, size = 0x4, scoped, tag = 'scoped memory for tpu_custom_call.1']
    #allocation4 [shape = 's32[1]{0}', space=sflag, size = 0x4, scoped, tag = 'scoped memory for tpu_custom_call.1']
    #allocation5 [shape = 'u8[16384]{0}', space=vmem, size = 0x4000, scoped, tag = 'input window, operand 1, single buffered']
    #allocation6 [shape = 's32[1]{0}', space=sflag, size = 0x4, scoped, tag = 'scoped memory for tpu_custom_call.1']
    #allocation7 [shape = 'u8[8192]{0}', space=vmem, size = 0x2000, scoped, tag = 'output window, operand 0, single buffered']
    %7 = vsyncpa [#allocation3], 0
    %8 = vsyncpa [#allocation6], 0
    %9 = vsyncpa [#allocation4], 0
    // Predicated region
    $region2: #{tpu_custom_call.1} parent=1 // pred_check
      _
    $region3: #{tpu_custom_call.1} parent=1 // pred_check_branch
      %11 = sbr.rel (0) target = $region5
    $region4: #{tpu_custom_call.1} parent=1 // pred_region
      %13 = vsyncadd [#allocation3], 0
      %s14 = sshll.u32 %s0, 4
      %s15 = int_to_ptr.hbm [resolvable:$true] %s14
      %s16 = sshll.u32 [#allocation2], 4
      %s17 = int_to_ptr.vmem [resolvable:$true] %s16
      %22 = dma.hbm_to_vmem [thread:$0]  %s15, 256, %s17, [#allocation3], 128, 128, 8
    $region5: #{tpu_custom_call.1} parent=1 // pred_fallthru
      _
    // Predicated region
    $region6: #{tpu_custom_call.1} parent=1 // pred_check
      _
    $region7: #{tpu_custom_call.1} parent=1 // pred_check_branch
      %24 = sbr.rel (0) target = $region9
    $region8: #{tpu_custom_call.1} parent=1 // pred_region
      %26 = vsyncadd [#allocation6], 0
      %s27 = sshll.u32 %s1, 4
      %s28 = int_to_ptr.hbm [resolvable:$true] %s27
      %s29 = sshll.u32 [#allocation5], 4
      %s30 = int_to_ptr.vmem [resolvable:$true] %s29
      %35 = dma.hbm_to_vmem [thread:$0]  %s28, 512, %s30, [#allocation6], 128, 128, 8
    $region9: #{tpu_custom_call.1} parent=1 // pred_fallthru
      _
    // Predicated region
    $region10: #{tpu_custom_call.1} parent=1 // pred_check
      _
    $region11: #{tpu_custom_call.1} parent=1 // pred_check_branch
      %37 = sbr.rel (0) target = $region13
    $region12: #{tpu_custom_call.1} parent=1 // pred_region
      %39 = dma.done [#allocation3], 256
    $region13: #{tpu_custom_call.1} parent=1 // pred_fallthru
      _
    // Predicated region
    $region14: #{tpu_custom_call.1} parent=1 // pred_check
      _
    $region15: #{tpu_custom_call.1} parent=1 // pred_check_branch
      %41 = sbr.rel (0) target = $region17
    $region16: #{tpu_custom_call.1} parent=1 // pred_region
      %43 = dma.done [#allocation6], 512
    $region17: #{tpu_custom_call.1} parent=1 // pred_fallthru
      _
    %v44 = vld [vmem:[#allocation2] sm:$0xff]
    %v45 = vld [vmem:[#allocation2 + $0x8] sm:$0xff]
    %v46 = vld [vmem:[#allocation5] sm:$0xff]
    %v47 = vld [vmem:[#allocation5 + $0x8] sm:$0xff]
    %v48 = vld [vmem:[#allocation5 + $0x10] sm:$0xff]
    %v49 = vld [vmem:[#allocation5 + $0x18] sm:$0xff]
    %vm50 = vcmask 261120
    %v52 = vsel %vm50, %v44, 0
    %v55 = vsel %vm50, %v45, 0
    %57 = vmatpush.msra.mxu0 0.0
    %58 = vmatpush.msra.mxu0 0.0
    %59 = vmatpush.msra.mxu0 0.0
    %60 = vmatpush.msra.mxu0 0.0
    %61 = vmatpush.msra.mxu0 0.0
    %62 = vmatpush.msra.mxu0 0.0
    %63 = vmatpush.msra.mxu0 0.0
    %64 = vmatpush.msra.mxu0 0.0
    %65 = vmatpush.msra.mxu0 0.0
    %66 = vmatpush.msra.mxu0 0.0
    %67 = vmatpush.msra.mxu0 0.0
    %68 = vmatpush.msra.mxu0 0.0
    %69 = vmatpush.msra.mxu0 %v49
    %70 = vmatpush.msra.mxu0 %v48
    %71 = vmatpush.msra.mxu0 %v47
    %72 = vmatpush.msra.mxu0 %v46
    %73 = vmatmul.f32.gmra.mxu0 %v52
    %v74 = vpop.f32.mrf.mxu0
    %v75 = vadd.f32 0.0, %v74
    %76 = vmatmul.f32.gmra.mxu0 %v55
    %v77 = vpop.f32.mrf.mxu0
    %v78 = vadd.f32 0.0, %v77
    %79 = vdwg.mxu0
    %v80 = vlaneseq
    %v81 = vshrl.u32 %v80, 7
    %v82 = vlaneseq
    %v83 = vand.u32 %v82, 127
    %vm84 = vcmp.le.s32.totalorder %v83, %v81
    %86 = vrot.lane.b32.xlu0 %v75, 112
    %v87 = vpop.permute.xlu0 %86
    %vm88 = vcmask 130048
    %v89 = vsel %vm88, %v87, 0
    %v91 = vsel %vm88, %v75, 0
    %93 = vmatpush.xpose.msra.mxu0 0.0
    %94 = vmatpush.xpose.msra.mxu0 0.0
    %95 = vmatpush.xpose.msra.mxu0 0.0
    %96 = vmatpush.xpose.msra.mxu0 0.0
    %97 = vmatpush.xpose.msra.mxu0 0.0
    %98 = vmatpush.xpose.msra.mxu0 0.0
    %99 = vmatpush.xpose.msra.mxu0 0.0
    %100 = vmatpush.xpose.msra.mxu0 0.0
    %101 = vmatpush.xpose.msra.mxu0 0.0
    %102 = vmatpush.xpose.msra.mxu0 0.0
    %103 = vmatpush.xpose.msra.mxu0 0.0
    %104 = vmatpush.xpose.msra.mxu0 0.0
    %105 = vmatpush.xpose.msra.mxu0 0.0
    %106 = vmatpush.xpose.msra.mxu0 0.0
    %107 = vmatpush.xpose.msra.mxu0 0.0
    %108 = vmatpush.xpose.msra.mxu0 %v91
    %109 = vmatmul.f32.gmra.mxu0 %v89
    %v110 = vpop.f32.mrf.mxu0
    %v111 = vadd.f32 0.0, %v110
    %112 = vdwg.mxu0
    %v113 = vsel %vm84, %v111, -inf
    %vm114 = vcmask 64512
    %v115 = vsel %vm114, %v113, -inf
    %116 = vmax.xlane.f32.xlu0 %v115
    %v117 = vpop.xlane.xlu0 %116
    %v118 = vsub.f32 %v113, %v117
    %v119 = vmul.f32 %v118, 1.442695
    %v120 = vpow.pop %v119
    %v121 = vsel %vm114, %v120, 0.0
    %122 = vadd.xlane.f32.xlu0 %v121
    %v123 = vpop.xlane.xlu0 %122
    %v124 = vrcp.pop %v123
    %v125 = vmul.f32 %v120, %v124
    %126 = vrot.lane.b32.xlu0 %v75, 96
    %v127 = vpop.permute.xlu0 %126
    %v130 = vsel %vm114, %v125, 0
    %132 = vmatpush.msra.mxu0 0.0
    %133 = vmatpush.msra.mxu0 0.0
    %134 = vmatpush.msra.mxu0 0.0
    %135 = vmatpush.msra.mxu0 0.0
    %136 = vmatpush.msra.mxu0 0.0
    %137 = vmatpush.msra.mxu0 0.0
    %138 = vmatpush.msra.mxu0 0.0
    %139 = vmatpush.msra.mxu0 0.0
    %140 = vmatpush.msra.mxu0 0.0
    %141 = vmatpush.msra.mxu0 0.0
    %142 = vmatpush.msra.mxu0 0.0
    %143 = vmatpush.msra.mxu0 0.0
    %144 = vmatpush.msra.mxu0 0.0
    %145 = vmatpush.msra.mxu0 0.0
    %146 = vmatpush.msra.mxu0 0.0
    %147 = vmatpush.msra.mxu0 %v127
    %148 = vmatmul.f32.gmra.mxu0 %v130
    %v149 = vpop.f32.mrf.mxu0
    %v150 = vadd.f32 0.0, %v149
    %151 = vdwg.mxu0
    %152 = vst.msk [vmem:[#allocation7] sm:$0xff] %vm88, %v150
    %154 = vrot.lane.b32.xlu0 %v78, 112
    %v155 = vpop.permute.xlu0 %154
    %v156 = vsel %vm88, %v155, 0
    %v158 = vsel %vm88, %v78, 0
    %160 = vmatpush.xpose.msra.mxu0 0.0
    %161 = vmatpush.xpose.msra.mxu0 0.0
    %162 = vmatpush.xpose.msra.mxu0 0.0
    %163 = vmatpush.xpose.msra.mxu0 0.0
    %164 = vmatpush.xpose.msra.mxu0 0.0
    %165 = vmatpush.xpose.msra.mxu0 0.0
    %166 = vmatpush.xpose.msra.mxu0 0.0
    %167 = vmatpush.xpose.msra.mxu0 0.0
    %168 = vmatpush.xpose.msra.mxu0 0.0
    %169 = vmatpush.xpose.msra.mxu0 0.0
    %170 = vmatpush.xpose.msra.mxu0 0.0
    %171 = vmatpush.xpose.msra.mxu0 0.0
    %172 = vmatpush.xpose.msra.mxu0 0.0
    %173 = vmatpush.xpose.msra.mxu0 0.0
    %174 = vmatpush.xpose.msra.mxu0 0.0
    %175 = vmatpush.xpose.msra.mxu0 %v158
    %176 = vmatmul.f32.gmra.mxu0 %v156
    %v177 = vpop.f32.mrf.mxu0
    %v178 = vadd.f32 0.0, %v177
    %179 = vdwg.mxu0
    %v180 = vsel %vm84, %v178, -inf
    %v181 = vsel %vm114, %v180, -inf
    %182 = vmax.xlane.f32.xlu0 %v181
    %v183 = vpop.xlane.xlu0 %182
    %v184 = vsub.f32 %v180, %v183
    %v185 = vmul.f32 %v184, 1.442695
    %v186 = vpow.pop %v185
    %v187 = vsel %vm114, %v186, 0.0
    %188 = vadd.xlane.f32.xlu0 %v187
    %v189 = vpop.xlane.xlu0 %188
    %v190 = vrcp.pop %v189
    %v191 = vmul.f32 %v186, %v190
    %192 = vrot.lane.b32.xlu0 %v78, 96
    %v193 = vpop.permute.xlu0 %192
    %v196 = vsel %vm114, %v191, 0
    %198 = vmatpush.msra.mxu0 0.0
    %199 = vmatpush.msra.mxu0 0.0
    %200 = vmatpush.msra.mxu0 0.0
    %201 = vmatpush.msra.mxu0 0.0
    %202 = vmatpush.msra.mxu0 0.0
    %203 = vmatpush.msra.mxu0 0.0
    %204 = vmatpush.msra.mxu0 0.0
    %205 = vmatpush.msra.mxu0 0.0
    %206 = vmatpush.msra.mxu0 0.0
    %207 = vmatpush.msra.mxu0 0.0
    %208 = vmatpush.msra.mxu0 0.0
    %209 = vmatpush.msra.mxu0 0.0
    %210 = vmatpush.msra.mxu0 0.0
    %211 = vmatpush.msra.mxu0 0.0
    %212 = vmatpush.msra.mxu0 0.0
    %213 = vmatpush.msra.mxu0 %v193
    %214 = vmatmul.f32.gmra.mxu0 %v196
    %v215 = vpop.f32.mrf.mxu0
    %v216 = vadd.f32 0.0, %v215
    %217 = vdwg.mxu0
    %s218 = scalar_lea.vmem [#allocation7], 8
    %219 = vst.msk [vmem:[%s218] sm:$0xff] %vm88, %v216
    // Predicated region
    $region18: #{tpu_custom_call.1} parent=1 // pred_check
      _
    $region19: #{tpu_custom_call.1} parent=1 // pred_check_branch
      %221 = sbr.rel (0) target = $region21
    $region20: #{tpu_custom_call.1} parent=1 // pred_region
      %223 = vsyncadd [#allocation4], 0
      %s224 = sshll.u32 [#allocation7], 4
      %s225 = int_to_ptr.vmem [resolvable:$true] %s224
      %s226 = sshll.u32 %s2, 4
      %s227 = int_to_ptr.hbm [resolvable:$true] %s226
      %232 = dma.vmem_to_hbm [thread:$0]  %s225, 256, %s227, [#allocation4], 128, 128, 8
    $region21: #{tpu_custom_call.1} parent=1 // pred_fallthru
      _
    // Predicated region
    $region22: #{tpu_custom_call.1} parent=1 // pred_check
      _
    $region23: #{tpu_custom_call.1} parent=1 // pred_check_branch
      %234 = sbr.rel (0) target = $region25
    $region24: #{tpu_custom_call.1} parent=1 // pred_region
      %236 = dma.done [#allocation4], 256
    $region25: #{tpu_custom_call.1} parent=1 // pred_fallthru
      _
    %237 = vsyncpa [#allocation3], 1
    %238 = vsyncpa [#allocation6], 1
    %239 = vsyncpa [#allocation4], 1

</llo_original>
